<compile_context>
chip_gen: v5e
topology: v5e:2x2
jax: 0.10.0
libtpu: 0.0.40
codegen_flags: <defaults>
</compile_context>

<pallas_src>
import jax
import jax.numpy as jnp
from jax.experimental import pallas as pl
from jax.experimental.pallas import tpu as pltpu

_LANE = 128                   # minimum lane-dense width
_MAX_LANE_WIDTH = 8192        # widest 2-D row we try (64 vregs/row for f32)
_TILE_BYTES = 4 << 20         # ~4 MiB per tile: amortizes ~0.35 us/step
_VMEM_LIMIT_BYTES = 32 << 20  # in+out, double-buffered worst case = 16 MiB


def _copy_kernel(x_ref, o_ref):
    # Pure identity copy of the current tile; the pipelined DMAs do the work.
    o_ref[...] = x_ref[...]


def _pick_lane_width(total: int) -> int:
    """Largest power-of-two lane width (>=128) dividing `total`, else 0."""
    w = _MAX_LANE_WIDTH
    while w > _LANE and total % w != 0:
        w //= 2
    return w if total % w == 0 else 0


def _sublane_pack(itemsize: int) -> int:
    # Native packed sublane counts: f32->8, bf16/f16->16, int8/fp8->32.
    return {4: 8, 2: 16, 1: 32}.get(itemsize, 8)


def _pick_tile_rows(rows: int, w: int, itemsize: int) -> int:
    """Tile rows: full extent if it fits, else the largest even divisor of
    `rows` that is a multiple of the sublane pack and <= ~4 MiB per tile."""
    row_bytes = w * itemsize
    if rows * row_bytes <= _TILE_BYTES:
        return rows  # one full-extent block (always a legal BlockSpec)
    pack = _sublane_pack(itemsize)
    max_rows = max(pack, _TILE_BYTES // row_bytes)
    cand = (max_rows // pack) * pack
    while cand >= pack:
        if rows % cand == 0:
            return cand  # grid divides evenly -> every store unmasked
        cand -= pack
    # No even divisor: ragged last block (Pallas masks it; correct, slower).
    return (max_rows // pack) * pack


def structure_forward(x: jax.Array, *, materialize: bool = False) -> jax.Array:
    """Equivalent of torch `x.view(-1, 4, 4)` on a contiguous tensor."""
    total = x.size
    assert total % 16 == 0, "element count must be divisible by 16 for view(-1,4,4)"
    out_shape = (total // 16, 4, 4)

    # view() is metadata-only: the fastest kernel is no kernel at all.
    if not materialize:
        return jnp.reshape(x, out_shape)

    itemsize = jnp.dtype(x.dtype).itemsize
    w = _pick_lane_width(total)
    if w == 0:
        # A non-128-divisible tail would force masked partial stores plus
        # pad/slice HBM copies; the free XLA reshape wins.
        return jnp.reshape(x, out_shape)

    rows = total // w
    x2d = jnp.reshape(x, (rows, w))  # row-major, metadata-only glue
    tile_rows = _pick_tile_rows(rows, w, itemsize)
    grid = (pl.cdiv(rows, tile_rows),)

    out2d = pl.pallas_call(
        _copy_kernel,
        out_shape=jax.ShapeDtypeStruct((rows, w), x.dtype),
        grid_spec=pltpu.PrefetchScalarGridSpec(
            num_scalar_prefetch=0,
            grid=grid,
            in_specs=[pl.BlockSpec((tile_rows, w), lambda i: (i, 0))],
            out_specs=pl.BlockSpec((tile_rows, w), lambda i: (i, 0)),
        ),
        compiler_params=pltpu.CompilerParams(
            dimension_semantics=("parallel",),   # lets v7x shard across 2 TCs
            vmem_limit_bytes=_VMEM_LIMIT_BYTES,  # 4 MiB tiles safe on v5e too
        ),
        cost_estimate=pl.CostEstimate(
            flops=0, transcendentals=0, bytes_accessed=2 * total * itemsize),
    )(x2d)

    # Final (-1, 4, 4) view is metadata-only again.
    return jnp.reshape(out2d, out_shape)


if __name__ == "__main__":
    key = jax.random.PRNGKey(0)
    x = jax.random.normal(key, (2, 4, 16, 16), dtype=jnp.float32)
    ref = jnp.reshape(x, (-1, 4, 4))

    # Default path: metadata-only view (no kernel launched).
    y_view = structure_forward(x)
    jax.block_until_ready(y_view)
    assert y_view.shape == (2 * 4 * 16 * 16 // 16, 4, 4), y_view.shape
    assert y_view.dtype == x.dtype
    assert bool(jnp.array_equal(y_view, ref))

    # Materialized path: runs the Pallas identity-copy kernel (wide lanes,
    # single full-extent block for this small input).
    y_copy = structure_forward(x, materialize=True)
    jax.block_until_ready(y_copy)
    assert bool(jnp.array_equal(y_copy, ref))

    # Larger f32 input (8 MiB): multi-block grid with even division,
    # 4 MiB tiles, 8192-wide lane-dense rows.
    xb = jax.random.normal(jax.random.PRNGKey(1), (16, 16, 128, 128), dtype=jnp.float32)
    yb = structure_forward(xb, materialize=True)
    jax.block_until_ready(yb)
    assert bool(jnp.array_equal(yb, jnp.reshape(xb, (-1, 4, 4))))

    # bf16 input exercises the 16-sublane pack path.
    xc = jax.random.normal(jax.random.PRNGKey(2), (4, 16, 64, 64)).astype(jnp.bfloat16)
    yc = structure_forward(xc, materialize=True)
    jax.block_until_ready(yc)
    assert bool(jnp.array_equal(yc, jnp.reshape(xc, (-1, 4, 4))))

    # Non-128-divisible total falls back to the free reshape even when asked
    # to materialize (masked tails would only slow it down).
    xd = jnp.arange(3 * 4 * 4, dtype=jnp.float32).reshape(3, 4, 4)
    yd = structure_forward(xd, materialize=True)
    jax.block_until_ready(yd)
    assert bool(jnp.array_equal(yd, jnp.reshape(xd, (-1, 4, 4))))

    print("KERNEL_OK")
</pallas_src>

<mosaic_0001>
module attributes {stable_mosaic.version = 11 : i64} {
  func.func @_copy_kernel(%arg0: i32, %arg1: memref<1x2048xf32, #tpu.memory_space<vmem>>, %arg2: memref<1x2048xf32, #tpu.memory_space<vmem>>) attributes {dimension_semantics = [#tpu.dimension_semantics<parallel>], iteration_bounds = array<i64: 1>, scalar_prefetch = 0 : i64, scratch_operands = 0 : i64, tpu.core_type = #tpu.core_type<tc>, window_params = [{transform_indices = @transform_0, window_bounds = array<i64: 1, 2048>}, {transform_indices = @transform_1, window_bounds = array<i64: 1, 2048>}]} {
    %c0 = arith.constant 0 : index
    %c0_0 = arith.constant 0 : index
    %0 = vector.load %arg1[%c0, %c0_0] : memref<1x2048xf32, #tpu.memory_space<vmem>>, vector<1x2048xf32>
    %c0_1 = arith.constant 0 : index
    %c0_2 = arith.constant 0 : index
    %1 = vector.load %arg2[%c0_1, %c0_2] : memref<1x2048xf32, #tpu.memory_space<vmem>>, vector<1x2048xf32>
    tpu.vector_store %arg2[%c0_1, %c0_2], %0 {strides = array<i32>} : memref<1x2048xf32, #tpu.memory_space<vmem>>, vector<1x2048xf32>,
    return
  }
  func.func @transform_0(%arg0: i32) -> (i32, i32) {
    %c0_i32 = arith.constant 0 : i32
    %c0_i32_0 = arith.constant 0 : i32
    return %arg0, %c0_i32 : i32, i32
  }
  func.func @transform_1(%arg0: i32) -> (i32, i32) {
    %c0_i32 = arith.constant 0 : i32
    %c0_i32_0 = arith.constant 0 : i32
    return %arg0, %c0_i32 : i32, i32
  }
}

</mosaic_0001>

<llo_original>
// kernel: tpu_custom_call.1
$region0: #{tpu_custom_call.1}
  #allocation0 [shape = 'u32[]', space=smem, size = 0x4, offset = 0x4, fixed_abs, tag = 'smem constant byte address 0x4 - core index']
  #allocation1 [shape = 'u32[72,128]{1,0:T(1,128)}', space=vmem, size = 0x9000, scoped, tag = 'internal scratch']
  %s0 = inlined_call_operand.hbm [shape: f32[1,2048], index: 0, kind: input, shape index: {}]
  %s1 = inlined_call_operand.hbm [shape: f32[1,2048], index: 1, kind: output, shape index: {}]
  %s2 = sld [smem:[#allocation0]]
  $region18: #{tpu_custom_call.1} parent=0
    _
  %s4 = ssub.s32 1, %s2
  %s5 = scalar_select 0, %s4, %s2
  $region1: #{tpu_custom_call.1} parent=0
    #allocation2 [shape = 'u8[8192]{0}', space=vmem, size = 0x2000, scoped, tag = 'input window, operand 0, single buffered']
    #allocation3 [shape = 's32[1]{0}', space=sflag, size = 0x4, scoped, tag = 'scoped memory for tpu_custom_call.1']
    #allocation4 [shape = 's32[1]{0}', space=sflag, size = 0x4, scoped, tag = 'scoped memory for tpu_custom_call.1']
    #allocation5 [shape = 'u8[8192]{0}', space=vmem, size = 0x2000, scoped, tag = 'output window, operand 0, single buffered']
    %6 = vsyncpa [#allocation3], 0
    %7 = vsyncpa [#allocation4], 0
    // Predicated region
    $region2: #{tpu_custom_call.1} parent=1 // pred_check
      _
    $region3: #{tpu_custom_call.1} parent=1 // pred_check_branch
      %9 = sbr.rel (0) target = $region5
    $region4: #{tpu_custom_call.1} parent=1 // pred_region
      %11 = vsyncadd [#allocation3], 0
      %s13 = sshll.u32 %s0, 4
      %s14 = int_to_ptr.hbm [resolvable:$true] %s13
      %s15 = sshll.u32 [#allocation2], 4
      %s16 = int_to_ptr.vmem [resolvable:$true] %s15
      %18 = dma.hbm_to_vmem [thread:$0]  %s14, 256, %s16, [#allocation3]
    $region5: #{tpu_custom_call.1} parent=1 // pred_fallthru
      _
    // Predicated region
    $region6: #{tpu_custom_call.1} parent=1 // pred_check
      _
    $region7: #{tpu_custom_call.1} parent=1 // pred_check_branch
      %20 = sbr.rel (0) target = $region9
    $region8: #{tpu_custom_call.1} parent=1 // pred_region
      %22 = dma.done [#allocation3], 256
    $region9: #{tpu_custom_call.1} parent=1 // pred_fallthru
      _
    %v23 = vld [vmem:[#allocation2] sm:$0xff]
    %v24 = vld [vmem:[#allocation2 + $0x8] sm:$0xff]
    %25 = vst [vmem:[#allocation5] sm:$0xff] %v23
    %26 = vst [vmem:[#allocation5 + $0x8] sm:$0xff] %v24
    // Predicated region
    $region10: #{tpu_custom_call.1} parent=1 // pred_check
      _
    $region11: #{tpu_custom_call.1} parent=1 // pred_check_branch
      %28 = sbr.rel (0) target = $region13
    $region12: #{tpu_custom_call.1} parent=1 // pred_region
      %30 = vsyncadd [#allocation4], 0
      %s32 = sshll.u32 [#allocation5], 4
      %s33 = int_to_ptr.vmem [resolvable:$true] %s32
      %s34 = sshll.u32 %s1, 4
      %s35 = int_to_ptr.hbm [resolvable:$true] %s34
      %37 = dma.vmem_to_hbm [thread:$0]  %s33, 256, %s35, [#allocation4]
    $region13: #{tpu_custom_call.1} parent=1 // pred_fallthru
      _
    // Predicated region
    $region14: #{tpu_custom_call.1} parent=1 // pred_check
      _
    $region15: #{tpu_custom_call.1} parent=1 // pred_check_branch
      %39 = sbr.rel (0) target = $region17
    $region16: #{tpu_custom_call.1} parent=1 // pred_region
      %41 = dma.done [#allocation4], 256
    $region17: #{tpu_custom_call.1} parent=1 // pred_fallthru
      _
    %42 = vsyncpa [#allocation3], 1
    %43 = vsyncpa [#allocation4], 1

</llo_original>
